<compile_context>
chip_gen: v6e
topology: v6e:2x2x1
jax: 0.10.0
libtpu: 0.0.40
codegen_flags: <defaults>
</compile_context>

<pallas_src>
import math

import jax
import jax.numpy as jnp
from jax.experimental import pallas as pl
from jax.experimental.pallas import tpu as pltpu


def _noise_add_kernel(x_ref, n_ref, o_ref):
    # Streaming broadcast-add: x block (TB, L) + noise block (1, L).
    # The sublane broadcast runs on the VPU, which has huge slack in this
    # DMA-bound kernel.
    o_ref[...] = x_ref[...] + n_ref[...]


def _sublane_mult(itemsize):
    # Sub-32-bit dtypes pack along sublanes.
    return {4: 8, 2: 16, 1: 32}.get(itemsize, 8)


def _choose_tb(rows, lane_w, itemsize, budget_bytes):
    """Rows per grid step.

    VMEM cost per step ~= 2 double-buffered x-in tiles + 2 double-buffered
    out tiles (the (1, L) noise block is negligible) = 4 * TB * lane_w * item.
    """
    mult = _sublane_mult(itemsize)
    per_row = max(1, lane_w * itemsize)
    tb = budget_bytes // (4 * per_row)
    tb = max(mult, (tb // mult) * mult)

    # Keep >= 2 grid steps when possible so "parallel" can shard the grid
    # across both TensorCores on v7x.
    half = (pl.cdiv(rows, 2) // mult) * mult
    if half >= mult:
        tb = min(tb, half)

    if tb >= rows:
        # Full extent: single step, exempt from the sublane-multiple rule.
        return rows

    # Prefer a TB that divides `rows` evenly (avoid a masked trailing block),
    # without shrinking the block by more than 2x.
    d = tb
    while d >= mult and d >= tb // 2:
        if rows % d == 0:
            return d
        d -= mult
    return tb


def dynamic_g_noise(x, seed, *, mean=0.0, std=0.05, training=True,
                    donate=False,
                    budget_bytes=24 * 1024 * 1024,
                    vmem_limit_bytes=32 * 1024 * 1024):
    """Forward pass of DynamicGNoise.

    x: (N, C, H, W) with H == W (module's noise buffer is (shape, shape)).
    seed: int; controls the Gaussian noise sample (pass a fresh seed each
          training forward to mirror PyTorch's per-forward resampling).
    donate: if True, alias x's (flattened) buffer to the output — only safe
          when the caller no longer needs x.
    """
    if not training:
        return x

    N, C, H, W = x.shape
    assert H == W, "DynamicGNoise noise buffer is (shape, shape); needs H == W"
    nc, hw = N * C, H * W

    # Exact Gaussian noise (matches torch normal_ in distribution, not bits).
    # Computed in f32 then cast once to x.dtype (for bf16 activations this can
    # differ from PyTorch by one rounding step).
    key = jax.random.PRNGKey(seed)
    noise_row = (
        jax.random.normal(key, (1, hw), dtype=jnp.float32) * float(std) + float(mean)
    ).astype(x.dtype)

    # Lane-dense layout: fold G (N,C) slabs per lane-row if hw is not a
    # multiple of 128, tiling the noise row G times to match.
    g = 1
    if hw % 128 != 0:
        cand = 128 // math.gcd(hw, 128)
        if nc % cand == 0:
            g = cand
    rows, lane_w = nc // g, hw * g

    xf = x.reshape(rows, lane_w)
    noise_lane = jnp.tile(noise_row, (1, g)) if g > 1 else noise_row

    itemsize = jnp.dtype(x.dtype).itemsize
    tb = _choose_tb(rows, lane_w, itemsize, budget_bytes)
    grid = (pl.cdiv(rows, tb),)

    out = pl.pallas_call(
        _noise_add_kernel,
        out_shape=jax.ShapeDtypeStruct((rows, lane_w), x.dtype),
        grid=grid,
        in_specs=[
            pl.BlockSpec((tb, lane_w), lambda i: (i, 0)),  # x tiles stream
            pl.BlockSpec((1, lane_w), lambda i: (0, 0)),   # noise row: resident
        ],
        out_specs=pl.BlockSpec((tb, lane_w), lambda i: (i, 0)),
        compiler_params=pltpu.CompilerParams(
            dimension_semantics=("parallel",),
            vmem_limit_bytes=vmem_limit_bytes,
        ),
        input_output_aliases=({0: 0} if donate else {}),
    )(xf, noise_lane)

    return out.reshape(N, C, H, W)


if __name__ == "__main__":
    key = jax.random.PRNGKey(0)
    N, C, H, W = 2, 4, 16, 16
    x = jax.random.normal(key, (N, C, H, W), dtype=jnp.float32)

    mean, std = 0.0, 0.05
    y = dynamic_g_noise(x, seed=0, mean=mean, std=std, training=True)
    jax.block_until_ready(y)

    # Pure-JAX reference (same seed -> same noise tile).
    nkey = jax.random.PRNGKey(0)
    noise_hw = (
        jax.random.normal(nkey, (1, H * W), dtype=jnp.float32) * std + mean
    ).astype(x.dtype).reshape(H, W)
    expected = x + noise_hw[None, None, :, :]
    assert jnp.allclose(y, expected, atol=1e-6)

    # Broadcast semantics: the same (H, W) noise tile added to every (n, c) slab.
    d = y - x
    assert d.shape == x.shape
    assert jnp.allclose(d[0, 0], d[1, 3], atol=1e-6)
    assert jnp.allclose(d[0, 1], d[1, 0], atol=1e-6)

    # Eval mode: identity.
    y_eval = dynamic_g_noise(x, seed=0, mean=mean, std=std, training=False)
    assert jnp.allclose(y_eval, x)

    print("KERNEL_OK")
</pallas_src>

<mosaic_0001>
module attributes {stable_mosaic.version = 11 : i64} {
  func.func @_noise_add_kernel(%arg0: i32, %arg1: memref<8x256xf32, #tpu.memory_space<vmem>>, %arg2: memref<1x256xf32, #tpu.memory_space<vmem>>, %arg3: memref<8x256xf32, #tpu.memory_space<vmem>>) attributes {dimension_semantics = [#tpu.dimension_semantics<parallel>], iteration_bounds = array<i64: 1>, scalar_prefetch = 0 : i64, scratch_operands = 0 : i64, tpu.core_type = #tpu.core_type<tc>, window_params = [{transform_indices = @transform_0, window_bounds = array<i64: 8, 256>}, {pipeline_mode = #tpu.pipeline_mode<synchronous>, transform_indices = @transform_1, window_bounds = array<i64: 1, 256>}, {transform_indices = @transform_2, window_bounds = array<i64: 8, 256>}]} {
    %c0 = arith.constant 0 : index
    %c0_0 = arith.constant 0 : index
    %0 = vector.load %arg1[%c0, %c0_0] : memref<8x256xf32, #tpu.memory_space<vmem>>, vector<8x256xf32>
    %c0_1 = arith.constant 0 : index
    %c0_2 = arith.constant 0 : index
    %1 = vector.load %arg2[%c0_1, %c0_2] : memref<1x256xf32, #tpu.memory_space<vmem>>, vector<1x256xf32>
    %2 = vector.broadcast %1 : vector<1x256xf32> to vector<8x256xf32>
    %3 = arith.addf %0, %2 : vector<8x256xf32>
    %c0_3 = arith.constant 0 : index
    %c0_4 = arith.constant 0 : index
    %4 = vector.load %arg3[%c0_3, %c0_4] : memref<8x256xf32, #tpu.memory_space<vmem>>, vector<8x256xf32>
    tpu.vector_store %arg3[%c0_3, %c0_4], %3 {strides = array<i32>} : memref<8x256xf32, #tpu.memory_space<vmem>>, vector<8x256xf32>,
    return
  }
  func.func @transform_0(%arg0: i32) -> (i32, i32) {
    %c0_i32 = arith.constant 0 : i32
    %c0_i32_0 = arith.constant 0 : i32
    return %arg0, %c0_i32 : i32, i32
  }
  func.func @transform_1(%arg0: i32) -> (i32, i32) {
    %c0_i32 = arith.constant 0 : i32
    %c0_i32_0 = arith.constant 0 : i32
    %c0_i32_1 = arith.constant 0 : i32
    return %c0_i32, %c0_i32_0 : i32, i32
  }
  func.func @transform_2(%arg0: i32) -> (i32, i32) {
    %c0_i32 = arith.constant 0 : i32
    %c0_i32_0 = arith.constant 0 : i32
    return %arg0, %c0_i32 : i32, i32
  }
}

</mosaic_0001>

<llo_original>
// kernel: tpu_custom_call.1
$region0: #{tpu_custom_call.1}
  #allocation0 [shape = 'u32[]', space=smem, size = 0x4, offset = 0x4, fixed_abs, tag = 'smem constant byte address 0x4 - core index']
  #allocation1 [shape = 'u32[144,128]{1,0:T(1,128)}', space=vmem, size = 0x12000, scoped, tag = 'internal scratch']
  %s0 = inlined_call_operand.hbm [shape: f32[8,256], index: 0, kind: input, shape index: {}]
  %s1 = inlined_call_operand.hbm [shape: f32[1,256], index: 1, kind: input, shape index: {}]
  %s2 = inlined_call_operand.hbm [shape: f32[8,256], index: 2, kind: output, shape index: {}]
  %s3 = sld [smem:[#allocation0]]
  $region26: #{tpu_custom_call.1} parent=0
    _
  %s5 = ssub.s32 1, %s3
  %s6 = scalar_select 0, %s5, %s3
  $region1: #{tpu_custom_call.1} parent=0
    #allocation2 [shape = 'u8[8192]{0}', space=vmem, size = 0x2000, scoped, tag = 'input window, operand 0, single buffered']
    #allocation3 [shape = 's32[1]{0}', space=sflag, size = 0x4, scoped, tag = 'scoped memory for tpu_custom_call.1']
    #allocation4 [shape = 's32[1]{0}', space=sflag, size = 0x4, scoped, tag = 'scoped memory for tpu_custom_call.1']
    #allocation5 [shape = 'u8[1024]{0}', space=vmem, size = 0x400, scoped, tag = 'input window, operand 1, single buffered']
    #allocation6 [shape = 's32[1]{0}', space=sflag, size = 0x4, scoped, tag = 'scoped memory for tpu_custom_call.1']
    #allocation7 [shape = 'u8[8192]{0}', space=vmem, size = 0x2000, scoped, tag = 'output window, operand 0, single buffered']
    %7 = vsyncpa [#allocation3], 0
    %8 = vsyncpa [#allocation6], 0
    %9 = vsyncpa [#allocation4], 0
    // Predicated region
    $region2: #{tpu_custom_call.1} parent=1 // pred_check
      _
    $region3: #{tpu_custom_call.1} parent=1 // pred_check_branch
      %11 = sbr.rel (0) target = $region5
    $region4: #{tpu_custom_call.1} parent=1 // pred_region
      %s13 = ssub.s32 256, 256
      %14 = vsyncadd [#allocation3], %s13
      %s16 = sshll.u32 [#allocation2], 4
      %s17 = int_to_ptr.vmem [resolvable:$true] %s16
      %19 = dma.hbm_to_vmem [thread:$0]  %s0, 256, %s17, [#allocation3]
    $region5: #{tpu_custom_call.1} parent=1 // pred_fallthru
      _
    // Predicated region
    $region6: #{tpu_custom_call.1} parent=1 // pred_check
      _
    $region7: #{tpu_custom_call.1} parent=1 // pred_check_branch
      %21 = sbr.rel (0) target = $region9
    $region8: #{tpu_custom_call.1} parent=1 // pred_region
      %s23 = ssub.s32 32, 32
      %24 = vsyncadd [#allocation6], %s23
      %s26 = sshll.u32 [#allocation5], 4
      %s27 = int_to_ptr.vmem [resolvable:$true] %s26
      %29 = dma.hbm_to_vmem [thread:$0]  %s1, 32, %s27, [#allocation6]
    $region9: #{tpu_custom_call.1} parent=1 // pred_fallthru
      _
    // Predicated region
    $region10: #{tpu_custom_call.1} parent=1 // pred_check
      _
    $region11: #{tpu_custom_call.1} parent=1 // pred_check_branch
      %31 = sbr.rel (0) target = $region13
    $region12: #{tpu_custom_call.1} parent=1 // pred_region
      %32 = dma.done [#allocation3], 256
    $region13: #{tpu_custom_call.1} parent=1 // pred_fallthru
      _
    // Predicated region
    $region14: #{tpu_custom_call.1} parent=1 // pred_check
      _
    $region15: #{tpu_custom_call.1} parent=1 // pred_check_branch
      %34 = sbr.rel (0) target = $region17
    $region16: #{tpu_custom_call.1} parent=1 // pred_region
      %35 = dma.done [#allocation6], 32
    $region17: #{tpu_custom_call.1} parent=1 // pred_fallthru
      _
    %v36 = vld [vmem:[#allocation2] sm:$0xff]
    %v37 = vld [vmem:[#allocation2 + $0x8] sm:$0xff]
    %v38 = vld [vmem:[#allocation5] sm:$0x3]
    %v40 = vlaneseq
    %v41 = vshrl.u32 %v40, 7
    %v42 = vsub.s32 0, %v41
    %v43 = vrot.slane %v38, %v42
    %v44 = vlaneseq
    %v45 = vshrl.u32 %v44, 7
    %v46 = vsub.s32 1, %v45
    %v47 = vrot.slane %v38, %v46
    %v50 = vadd.f32 %v36, %v43
    %v51 = vadd.f32 %v37, %v47
    %52 = vst [vmem:[#allocation7] sm:$0xff] %v50
    %53 = vst [vmem:[#allocation7 + $0x8] sm:$0xff] %v51
    // Predicated region
    $region18: #{tpu_custom_call.1} parent=1 // pred_check
      _
    $region19: #{tpu_custom_call.1} parent=1 // pred_check_branch
      %55 = sbr.rel (0) target = $region21
    $region20: #{tpu_custom_call.1} parent=1 // pred_region
      %s57 = ssub.s32 256, 256
      %58 = vsyncadd [#allocation4], %s57
      %s60 = sshll.u32 [#allocation7], 4
      %s61 = int_to_ptr.vmem [resolvable:$true] %s60
      %63 = dma.vmem_to_hbm [thread:$0]  %s61, 256, %s2, [#allocation4]
    $region21: #{tpu_custom_call.1} parent=1 // pred_fallthru
      _
    // Predicated region
    $region22: #{tpu_custom_call.1} parent=1 // pred_check
      _
    $region23: #{tpu_custom_call.1} parent=1 // pred_check_branch
      %65 = sbr.rel (0) target = $region25
    $region24: #{tpu_custom_call.1} parent=1 // pred_region
      %66 = dma.done [#allocation4], 256
    $region25: #{tpu_custom_call.1} parent=1 // pred_fallthru
      _
    %67 = vsyncpa [#allocation3], 1
    %68 = vsyncpa [#allocation6], 1
    %69 = vsyncpa [#allocation4], 1

</llo_original>
